<compile_context>
chip_gen: v5e
topology: v5e:2x2
jax: 0.10.0
libtpu: 0.0.40
codegen_flags: <defaults>
</compile_context>

<pallas_src>
import functools

import jax
import jax.numpy as jnp
from jax import lax
from jax.experimental import pallas as pl
from jax.experimental.pallas import tpu as pltpu


def _round_up(a, b):
    return (a + b - 1) // b * b


# ----------------------------------------------------------------------------
# GeM pooling kernel
# ----------------------------------------------------------------------------
def _gem_kernel(p_ref, x_ref, o_ref, *, eps, inv_hw, rchunk, n_sub, unroll):
    # p_ref: SMEM (1,) scalar parameter
    # x_ref: VMEM (TR, HW) row tile, o_ref: VMEM (TR, 1)
    p = p_ref[0]
    inv_p = 1.0 / p                                   # hoisted once per block

    def run(pow_fn):
        def body(s, carry):
            r0 = pl.multiple_of(s * rchunk, rchunk)
            xr = x_ref[pl.ds(r0, rchunk), :].astype(jnp.float32)
            xr = jnp.maximum(xr, jnp.float32(eps))    # clamp(min=eps) BEFORE log
            xp = pow_fn(xr)                           # x ** p
            m = jnp.sum(xp, axis=-1, keepdims=True) * jnp.float32(inv_hw)
            # Final 1/p root: only NC transcendentals total (negligible).
            o_ref[pl.ds(r0, rchunk), :] = jnp.exp(jnp.log(m) * inv_p).astype(o_ref.dtype)
            return carry
        lax.fori_loop(0, n_sub, body, 0, unroll=unroll)

    # Fast path for the default/common GeM exponent p == 3: pure-VPU power
    # (no per-element EUP log/exp), keeping the kernel HBM-bound on v7x.
    is_cubic = p == jnp.float32(3.0)

    @pl.when(is_cubic)
    def _():
        run(lambda x: x * x * x)

    @pl.when(jnp.logical_not(is_cubic))
    def _():
        run(lambda x: jnp.exp(p * jnp.log(x)))        # general p (x >= eps > 0)


def gem_pallas(x, p, eps=1e-6):
    """GeM pooling. x: (N, C, H, W); p: (1,) learnable scalar -> (N, C, 1, 1)."""
    N, C, H, W = x.shape
    NC, HW = N * C, H * W
    x2d = x.reshape(NC, HW)
    itemsize = x2d.dtype.itemsize

    # Row sub-chunk: keep the (rchunk, HW) f32 intermediate <= ~128 KiB.
    rchunk = max(8, min(512, ((128 * 1024) // (HW * 4)) // 8 * 8))
    rchunk = min(rchunk, _round_up(NC, 8))

    # Rows per grid step: target ~8 MiB of input per step (amortizes the
    # ~0.35us per-step overhead even at v7x HBM bandwidth), but never (much)
    # more than the row-chunk-rounded array extent.
    target_bytes = 8 * 1024 * 1024
    n_sub = max(1, min(128, target_bytes // max(1, rchunk * HW * itemsize)))
    tr = min(rchunk * n_sub, _round_up(NC, rchunk))
    # Keep >= ~4 grid steps when NC allows, so the "parallel" axis can shard
    # across both v7x TensorCores (2+ steps per core).
    tr = min(tr, max(rchunk, _round_up(-(-NC // 4), rchunk)))
    n_sub = tr // rchunk

    grid = (pl.cdiv(NC, tr),)

    # Double-buffered input block must fit scoped VMEM; cap well inside v7x's
    # 64 MiB physical VMEM.
    block_bytes = tr * HW * itemsize
    vmem_limit = int(min(40 * 1024 * 1024,
                         max(32 * 1024 * 1024, 2 * block_bytes + (2 << 20))))

    cost = pl.CostEstimate(
        flops=3 * NC * HW,
        transcendentals=2 * NC * HW + 3 * NC,
        bytes_accessed=NC * HW * itemsize + NC * itemsize + 4,
    )

    out2d = pl.pallas_call(
        functools.partial(_gem_kernel, eps=float(eps), inv_hw=1.0 / HW,
                          rchunk=rchunk, n_sub=n_sub, unroll=(n_sub <= 8)),
        out_shape=jax.ShapeDtypeStruct((NC, 1), x.dtype),
        grid_spec=pl.GridSpec(
            grid=grid,
            in_specs=[
                pl.BlockSpec(memory_space=pltpu.SMEM),       # p (scalar param)
                pl.BlockSpec((tr, HW), lambda i: (i, 0)),    # x row tile
            ],
            out_specs=pl.BlockSpec((tr, 1), lambda i: (i, 0)),
        ),
        compiler_params=pltpu.CompilerParams(
            dimension_semantics=("parallel",),
            vmem_limit_bytes=vmem_limit,
        ),
        cost_estimate=cost,
    )(p.astype(jnp.float32), x2d)

    return out2d.reshape(N, C, 1, 1)


# ----------------------------------------------------------------------------
# Fused auxiliary heads: one matmul for [malignant | sex | age | site(5)]
# Weight is pre-transposed and lane-padded to 128 columns ONCE (prepare_*),
# so the per-call path has no host transpose and the output store is
# lane-dense.
# ----------------------------------------------------------------------------
_HEADS_LANE_PAD = 128


def _heads_kernel(f_ref, wt_ref, b_ref, o_ref):
    acc = jnp.dot(f_ref[...].astype(jnp.float32), wt_ref[...],
                  preferred_element_type=jnp.float32)
    o_ref[...] = (acc + b_ref[...]).astype(o_ref.dtype)


def prepare_aux_heads(w, b, lane_pad=_HEADS_LANE_PAD):
    """Pre-transpose + lane-pad the fused head weights (call once, not per step).

    w: (O, C) stacked [mal(1) | sex(1) | age(1) | site(5)]; b: (O,).
    Returns wt_pad: (C, lane_pad), b_pad: (1, lane_pad).
    """
    O, C = w.shape
    wt_pad = jnp.zeros((C, lane_pad), jnp.float32).at[:, :O].set(
        w.T.astype(jnp.float32))
    b_pad = jnp.zeros((1, lane_pad), jnp.float32).at[:, :O].set(
        b.astype(jnp.float32).reshape(1, O))
    return wt_pad, b_pad


def aux_heads_pallas(feat, wt_pad, b_pad, n_out):
    """feat: (N, C); wt_pad: (C, 128); b_pad: (1, 128) -> (N, n_out)."""
    N, C = feat.shape
    op = wt_pad.shape[1]
    out = pl.pallas_call(
        _heads_kernel,
        out_shape=jax.ShapeDtypeStruct((N, op), jnp.float32),
        in_specs=[pl.BlockSpec(memory_space=pltpu.VMEM)] * 3,
        out_specs=pl.BlockSpec(memory_space=pltpu.VMEM),
    )(feat, wt_pad, b_pad)
    return out[:, :n_out]


# ----------------------------------------------------------------------------
# ISIC_Aux_Model.forward after the backbone
# ----------------------------------------------------------------------------
def isic_aux_forward(features, p, eps, wt_pad, b_pad):
    # TODO(synk): the timm CNN backbone (`self.model`) is not translated; this
    # forward starts from its (N, C, H, W) output feature map.
    pooled = gem_pallas(features, p, eps)              # (N, C, 1, 1)
    flat = pooled.reshape(features.shape[0], -1)       # .flatten(1)
    logits = aux_heads_pallas(flat, wt_pad, b_pad, n_out=8)   # (N, 8)
    return {
        "malignant": logits[:, 0:1],
        "sex": logits[:, 1:2],
        "age_approx": logits[:, 2:3],
        "anatom_site_general": logits[:, 3:8],
    }


if __name__ == "__main__":
    key = jax.random.PRNGKey(0)
    k_x, k_w, k_b, k_x2, k_x3 = jax.random.split(key, 5)

    # Small shapes consistent with the module: backbone feature map (N, C, H, W).
    N, C, H, W = 2, 4, 16, 16
    x = jax.random.normal(k_x, (N, C, H, W), dtype=jnp.float32)

    p = jnp.ones((1,), dtype=jnp.float32) * 3.0        # GeM.__init__: ones(1) * 3
    eps = 1e-6
    n_out = 1 + 1 + 1 + 5                              # mal, sex, age, site(5)
    w_heads = 0.05 * jax.random.normal(k_w, (n_out, C), dtype=jnp.float32)
    b_heads = 0.01 * jax.random.normal(k_b, (n_out,), dtype=jnp.float32)

    # One-time head-weight prep (pre-transpose + lane pad) outside the hot path.
    wt_pad, b_pad = prepare_aux_heads(w_heads, b_heads)

    out = isic_aux_forward(x, p, eps, wt_pad, b_pad)
    out = jax.block_until_ready(out)

    # Pure-JAX reference (exercises the p == 3 VPU fast path).
    ref_pool = jnp.mean(jnp.maximum(x, eps) ** 3.0, axis=(-2, -1),
                        keepdims=True) ** (1.0 / 3.0)
    ref_logits = ref_pool.reshape(N, C) @ w_heads.T + b_heads
    assert out["malignant"].shape == (N, 1)
    assert out["anatom_site_general"].shape == (N, 5)
    got = jnp.concatenate([out["malignant"], out["sex"], out["age_approx"],
                           out["anatom_site_general"]], axis=1)
    assert jnp.allclose(got, ref_logits, rtol=1e-4, atol=1e-5)

    # Second check: N*C not a multiple of the row block and 7x7 feature maps,
    # exercising the partial-block path with a non-integer p (exp/log fallback).
    x2 = jax.random.normal(k_x2, (3, 5, 7, 7), dtype=jnp.float32)
    p2 = jnp.ones((1,), dtype=jnp.float32) * 2.5
    y2 = gem_pallas(x2, p2, eps)
    jax.block_until_ready(y2)
    ref2 = jnp.mean(jnp.maximum(x2, eps) ** 2.5, axis=(-2, -1),
                    keepdims=True) ** (1.0 / 2.5)
    assert y2.shape == (3, 5, 1, 1)
    assert jnp.allclose(y2, ref2, rtol=1e-4, atol=1e-5)

    # Third check: larger NC so the grid has multiple steps + a partial final
    # block, on the p == 3 fast path (covers the multi-TC / big-block config).
    x3 = jax.random.normal(k_x3, (2, 160, 16, 16), dtype=jnp.float32)
    y3 = gem_pallas(x3, p, eps)
    jax.block_until_ready(y3)
    ref3 = jnp.mean(jnp.maximum(x3, eps) ** 3.0, axis=(-2, -1),
                    keepdims=True) ** (1.0 / 3.0)
    assert y3.shape == (2, 160, 1, 1)
    assert jnp.allclose(y3, ref3, rtol=1e-4, atol=1e-5)

    print("KERNEL_OK")
</pallas_src>

<mosaic_0001>
module attributes {stable_mosaic.version = 11 : i64} {
  func.func @_gem_kernel(%arg0: i32, %arg1: memref<1xf32, #tpu.memory_space<smem>>, %arg2: memref<8x256xf32, #tpu.memory_space<vmem>>, %arg3: memref<8x1xf32, #tpu.memory_space<vmem>>) attributes {dimension_semantics = [#tpu.dimension_semantics<parallel>], iteration_bounds = array<i64: 1>, scalar_prefetch = 0 : i64, scratch_operands = 0 : i64, tpu.core_type = #tpu.core_type<tc>, window_params = [{transform_indices = @transform_0, window_bounds = array<i64: 1>}, {transform_indices = @transform_1, window_bounds = array<i64: 8, 256>}, {transform_indices = @transform_2, window_bounds = array<i64: 8, 1>}]} {
    %c0 = arith.constant 0 : index
    %0 = memref.load %arg1[%c0] : memref<1xf32, #tpu.memory_space<smem>>
    %cst = arith.constant 1.000000e+00 : f32
    %1 = arith.divf %cst, %0 : f32
    %cst_0 = arith.constant 3.000000e+00 : f32
    %2 = arith.cmpf oeq, %0, %cst_0 : f32
    %3 = arith.extui %2 : i1 to i32
    %c0_i32 = arith.constant 0 : i32
    %4 = arith.cmpi ne, %3, %c0_i32 : i32
    scf.if %4 {
      %c0_i32_2 = arith.constant 0 : i32
      %c8_i32 = arith.constant 8 : i32
      %8 = arith.muli %c0_i32_2, %c8_i32 : i32
      %9 = tpu.assume_multiple %8, 8 : i32
      %10 = arith.index_cast %9 : i32 to index
      %c0_3 = arith.constant 0 : index
      %11 = vector.load %arg2[%10, %c0_3] : memref<8x256xf32, #tpu.memory_space<vmem>>, vector<8x256xf32>
      %cst_4 = arith.constant 9.99999997E-7 : f32
      %12 = vector.broadcast %cst_4 : f32 to vector<8x256xf32>
      %13 = arith.maximumf %11, %12 : vector<8x256xf32>
      %14 = arith.mulf %13, %13 : vector<8x256xf32>
      %15 = arith.mulf %14, %13 : vector<8x256xf32>
      %cst_5 = arith.constant dense<0.000000e+00> : vector<8xf32>
      %16 = vector.multi_reduction <add>, %15, %cst_5 [1] : vector<8x256xf32> to vector<8xf32>
      %17 = vector.shape_cast %16 : vector<8xf32> to vector<8x1xf32>
      %cst_6 = arith.constant 3.906250e-03 : f32
      %18 = vector.broadcast %cst_6 : f32 to vector<8x1xf32>
      %19 = arith.mulf %17, %18 : vector<8x1xf32>
      %20 = math.log %19 : vector<8x1xf32>
      %21 = vector.broadcast %1 : f32 to vector<8x1xf32>
      %22 = arith.mulf %20, %21 : vector<8x1xf32>
      %23 = math.exp %22 : vector<8x1xf32>
      %24 = arith.index_cast %9 : i32 to index
      %c0_7 = arith.constant 0 : index
      %25 = vector.load %arg3[%24, %c0_7] : memref<8x1xf32, #tpu.memory_space<vmem>>, vector<8x1xf32>
      tpu.vector_store %arg3[%24, %c0_7], %23 {strides = array<i32>} : memref<8x1xf32, #tpu.memory_space<vmem>>, vector<8x1xf32>,
      %c1_i32 = arith.constant 1 : i32
    } else {
    }
    %true = arith.constant true
    %5 = arith.xori %2, %true : i1
    %6 = arith.extui %5 : i1 to i32
    %c0_i32_1 = arith.constant 0 : i32
    %7 = arith.cmpi ne, %6, %c0_i32_1 : i32
    scf.if %7 {
      %c0_i32_2 = arith.constant 0 : i32
      %c8_i32 = arith.constant 8 : i32
      %8 = arith.muli %c0_i32_2, %c8_i32 : i32
      %9 = tpu.assume_multiple %8, 8 : i32
      %10 = arith.index_cast %9 : i32 to index
      %c0_3 = arith.constant 0 : index
      %11 = vector.load %arg2[%10, %c0_3] : memref<8x256xf32, #tpu.memory_space<vmem>>, vector<8x256xf32>
      %cst_4 = arith.constant 9.99999997E-7 : f32
      %12 = vector.broadcast %cst_4 : f32 to vector<8x256xf32>
      %13 = arith.maximumf %11, %12 : vector<8x256xf32>
      %14 = math.log %13 : vector<8x256xf32>
      %15 = vector.broadcast %0 : f32 to vector<8x256xf32>
      %16 = arith.mulf %15, %14 : vector<8x256xf32>
      %17 = math.exp %16 : vector<8x256xf32>
      %cst_5 = arith.constant dense<0.000000e+00> : vector<8xf32>
      %18 = vector.multi_reduction <add>, %17, %cst_5 [1] : vector<8x256xf32> to vector<8xf32>
      %19 = vector.shape_cast %18 : vector<8xf32> to vector<8x1xf32>
      %cst_6 = arith.constant 3.906250e-03 : f32
      %20 = vector.broadcast %cst_6 : f32 to vector<8x1xf32>
      %21 = arith.mulf %19, %20 : vector<8x1xf32>
      %22 = math.log %21 : vector<8x1xf32>
      %23 = vector.broadcast %1 : f32 to vector<8x1xf32>
      %24 = arith.mulf %22, %23 : vector<8x1xf32>
      %25 = math.exp %24 : vector<8x1xf32>
      %26 = arith.index_cast %9 : i32 to index
      %c0_7 = arith.constant 0 : index
      %27 = vector.load %arg3[%26, %c0_7] : memref<8x1xf32, #tpu.memory_space<vmem>>, vector<8x1xf32>
      tpu.vector_store %arg3[%26, %c0_7], %25 {strides = array<i32>} : memref<8x1xf32, #tpu.memory_space<vmem>>, vector<8x1xf32>,
      %c1_i32 = arith.constant 1 : i32
    } else {
    }
    return
  }
  func.func @transform_0(%arg0: i32) -> i32 {
    %c0_i32 = arith.constant 0 : i32
    %c0_i32_0 = arith.constant 0 : i32
    return %c0_i32 : i32
  }
  func.func @transform_1(%arg0: i32) -> (i32, i32) {
    %c0_i32 = arith.constant 0 : i32
    %c0_i32_0 = arith.constant 0 : i32
    return %arg0, %c0_i32 : i32, i32
  }
  func.func @transform_2(%arg0: i32) -> (i32, i32) {
    %c0_i32 = arith.constant 0 : i32
    %c0_i32_0 = arith.constant 0 : i32
    return %arg0, %c0_i32 : i32, i32
  }
}

</mosaic_0001>

<llo_original>
// kernel: tpu_custom_call.1
$region0: #{tpu_custom_call.1}
  #allocation0 [shape = 'u32[]', space=smem, size = 0x4, offset = 0x4, fixed_abs, tag = 'smem constant byte address 0x4 - core index']
  #allocation1 [shape = 'u32[72,128]{1,0:T(1,128)}', space=vmem, size = 0x9000, scoped, tag = 'internal scratch']
  #allocation2 [shape = 'f32[1]{0:T(128)S(6)}', space=smem, size = 0x200, scoped, tag = 'scoped memory for tpu_custom_call.1']
  %s0 = inlined_call_operand.<no memory space> [shape: f32[1], index: 0, kind: input, shape index: {}]
  %s1 = inlined_call_operand.hbm [shape: f32[8,256], index: 1, kind: input, shape index: {}]
  %s2 = inlined_call_operand.vmem [shape: f32[8,1], index: 2, kind: output, shape index: {}]
  %s3 = sld [smem:[#allocation0]]
  $region30: #{tpu_custom_call.1} parent=0
    _
  %s5 = ssub.s32 1, %s3
  %s6 = scalar_select 0, %s5, %s3
  %7 = sst [smem:[#allocation2]] %s0
  $region1: #{tpu_custom_call.1} parent=0
    #allocation3 [shape = 'u8[8192]{0}', space=vmem, size = 0x2000, scoped, tag = 'input window, operand 1, single buffered']
    #allocation4 [shape = 's32[1]{0}', space=sflag, size = 0x4, scoped, tag = 'scoped memory for tpu_custom_call.1']
    %8 = vsyncpa [#allocation4], 0
    // Predicated region
    $region2: #{tpu_custom_call.1} parent=1 // pred_check
      _
    $region3: #{tpu_custom_call.1} parent=1 // pred_check_branch
      %10 = sbr.rel (0) target = $region5
    $region4: #{tpu_custom_call.1} parent=1 // pred_region
      _
    $region5: #{tpu_custom_call.1} parent=1 // pred_fallthru
      _
    // Predicated region
    $region6: #{tpu_custom_call.1} parent=1 // pred_check
      _
    $region7: #{tpu_custom_call.1} parent=1 // pred_check_branch
      %12 = sbr.rel (0) target = $region9
    $region8: #{tpu_custom_call.1} parent=1 // pred_region
      %14 = vsyncadd [#allocation4], 0
      %s16 = sshll.u32 %s1, 4
      %s17 = int_to_ptr.hbm [resolvable:$true] %s16
      %s18 = sshll.u32 [#allocation3], 4
      %s19 = int_to_ptr.vmem [resolvable:$true] %s18
      %21 = dma.hbm_to_vmem [thread:$0]  %s17, 256, %s19, [#allocation4]
    $region9: #{tpu_custom_call.1} parent=1 // pred_fallthru
      _
    // Predicated region
    $region10: #{tpu_custom_call.1} parent=1 // pred_check
      _
    $region11: #{tpu_custom_call.1} parent=1 // pred_check_branch
      %23 = sbr.rel (0) target = $region13
    $region12: #{tpu_custom_call.1} parent=1 // pred_region
      %25 = dma.done [#allocation4], 256
    $region13: #{tpu_custom_call.1} parent=1 // pred_fallthru
      _
    %s26 = sld [smem:[#allocation2]]
    %v27 = vstv %s26
    %v28 = vrcp.pop %v27
    %v29 = vmul.f32 %v27, %v28
    %v30 = vsub.f32 1.0, %v29
    %v31 = vmul.f32 %v28, %v30
    %v32 = vadd.f32 %v28, %v31
    %vm33 = vweird.f32 %v27
    %vm34 = vweird.f32 %v28
    %vm35 = vmor %vm33, %vm34
    %v36 = vsel %vm35, %v28, %v32
    %v37 = vand.u32 2147483647, %v27
    %vm38 = vcmp.eq.f32.partialorder %v37, 8.507059e+37
    %v39 = vand.u32 %v27, 2147483648
    %v40 = vor.u32 1.1754944e-38, %v39
    %v41 = vsel %vm38, %v40, %v36
    %s42 = vtos %v41
    %p43 = scmp.eq.f32.partialorder %s26, 3.0
    // Predicated region
    $region14: #{tpu_custom_call.1} parent=1 // pred_check
      %p44 = pneg %p43
    $region15: #{tpu_custom_call.1} parent=1 // pred_check_branch
      %46 = sbr.rel (%p44) target = $region17
    $region16: #{tpu_custom_call.1} parent=1 // pred_region
      %s47 = smul.u32 0, 2
      %s48 = smul.addr %s47, 8
      %s49 = scalar_lea.vmem [#allocation3], %s48
      %v50 = vld [vmem:[%s49] sm:$0xff]
      %v51 = vld [vmem:[%s49 + $0x8] sm:$0xff]
      %v52 = vmax.f32 %v50, 1e-06
      %v53 = vmax.f32 %v51, 1e-06
      %v54 = vmul.f32 %v52, %v52
      %v55 = vmul.f32 %v53, %v53
      %v56 = vmul.f32 %v54, %v52
      %v57 = vmul.f32 %v55, %v53
      %v58 = vadd.f32 %v56, %v57
      %59 = vadd.xlane.f32.xlu0 %v58
      %v60 = vpop.xlane.xlu0 %59
      %v61 = vmul.f32 %v60, 0.00390625
      %v62 = vlog2.pop %v61
      %v63 = vmul.f32 %v62, 0.6931472
      %v64 = vstv %s42
      %v65 = vmul.f32 %v63, %v64
      %v66 = vmul.f32 %v65, 1.442695
      %v67 = vpow.pop %v66
      %vm68 = vcmask 7168
      %69 = vst.msk [vmem:[%s2] sm:$0xff] %vm68, %v67
    $region17: #{tpu_custom_call.1} parent=1 // pred_fallthru
      _
    %p70 = pneg %p43
    // Predicated region
    $region18: #{tpu_custom_call.1} parent=1 // pred_check
      _
    $region19: #{tpu_custom_call.1} parent=1 // pred_check_branch
      %72 = sbr.rel (%p43) target = $region21
    $region20: #{tpu_custom_call.1} parent=1 // pred_region
      %s73 = smul.u32 0, 2
      %s74 = smul.addr %s73, 8
      %s75 = scalar_lea.vmem [#allocation3], %s74
      %v76 = vld [vmem:[%s75] sm:$0xff]
      %v77 = vld [vmem:[%s75 + $0x8] sm:$0xff]
      %v78 = vmax.f32 %v76, 1e-06
      %v79 = vmax.f32 %v77, 1e-06
      %v80 = vlog2.pop %v78
      %v81 = vmul.f32 %v80, 0.6931472
      %v82 = vlog2.pop %v79
      %v83 = vmul.f32 %v82, 0.6931472
      %v84 = vstv %s26
      %v85 = vmul.f32 %v84, %v81
      %v86 = vmul.f32 %v84, %v83
      %v87 = vmul.f32 %v85, 1.442695
      %v88 = vpow.pop %v87
      %v89 = vmul.f32 %v86, 1.442695
      %v90 = vpow.pop %v89
      %v91 = vadd.f32 %v88, %v90
      %92 = vadd.xlane.f32.xlu0 %v91
      %v93 = vpop.xlane.xlu0 %92
      %v94 = vmul.f32 %v93, 0.00390625
      %v95 = vlog2.pop %v94
      %v96 = vmul.f32 %v95, 0.6931472
      %v97 = vstv %s42
      %v98 = vmul.f32 %v96, %v97
      %v99 = vmul.f32 %v98, 1.442695
      %v100 = vpow.pop %v99
      %vm101 = vcmask 7168
      %102 = vst.msk [vmem:[%s2] sm:$0xff] %vm101, %v100
    $region21: #{tpu_custom_call.1} parent=1 // pred_fallthru
      _
    // Predicated region
    $region22: #{tpu_custom_call.1} parent=1 // pred_check
      _
    $region23: #{tpu_custom_call.1} parent=1 // pred_check_branch
      %104 = sbr.rel (0) target = $region25
    $region24: #{tpu_custom_call.1} parent=1 // pred_region
      _
    $region25: #{tpu_custom_call.1} parent=1 // pred_fallthru
      _
    // Predicated region
    $region26: #{tpu_custom_call.1} parent=1 // pred_check
      _
    $region27: #{tpu_custom_call.1} parent=1 // pred_check_branch
      %106 = sbr.rel (0) target = $region29
    $region28: #{tpu_custom_call.1} parent=1 // pred_region
      _
    $region29: #{tpu_custom_call.1} parent=1 // pred_fallthru
      _
    %107 = vsyncpa [#allocation4], 1

</llo_original>
